<compile_context>
chip_gen: v5e
topology: v5e:2x2
jax: 0.10.0
libtpu: 0.0.40
codegen_flags: <defaults>
</compile_context>

<pallas_src>
import functools
import math

import jax
import jax.numpy as jnp
import numpy as np
from jax.experimental import pallas as pl
from jax.experimental.pallas import tpu as pltpu

# ---- static config (small, consistent with the module) ----
EMB_DIM = 32
N_HEADS = 4
HEAD_DIM = EMB_DIM // N_HEADS
HIDDEN = 4 * EMB_DIM
SEQ = 8
BATCH = 2
LN_EPS = 1e-5
NEG_BIG = -1e30

# rows of the packed (8, D) vector tile
ROW_LN1_W, ROW_LN1_B, ROW_LN2_W, ROW_LN2_B, ROW_BPROJ, ROW_B2 = range(6)


def _layernorm(v, w, b):
    # subtract-mean form (numerically safer than E[x^2]-E[x]^2; review concern).
    mean = jnp.mean(v, axis=-1, keepdims=True)
    centered = v - mean
    var = jnp.mean(centered * centered, axis=-1, keepdims=True)
    return centered * jax.lax.rsqrt(var + LN_EPS) * w + b


def transformer_block_kernel(x_ref, vec_ref, w_attn_ref, w1b1_ref, w2_ref, o_ref,
                             *, seq_len, n_heads, head_dim, emb_dim):
    T, D = seq_len, emb_dim
    x = x_ref[...]                       # (T, D): one sequence per grid step
    vecs = vec_ref[...]                  # (8, D) packed small vectors (single VMEM tile)
    ln1_w = vecs[ROW_LN1_W:ROW_LN1_W + 1, :]
    ln1_b = vecs[ROW_LN1_B:ROW_LN1_B + 1, :]
    ln2_w = vecs[ROW_LN2_W:ROW_LN2_W + 1, :]
    ln2_b = vecs[ROW_LN2_B:ROW_LN2_B + 1, :]
    bproj = vecs[ROW_BPROJ:ROW_BPROJ + 1, :]
    b2 = vecs[ROW_B2:ROW_B2 + 1, :]

    # ---- LayerNorm 1 ----
    h = _layernorm(x, ln1_w, ln1_b)

    # ---- fused QKV projection: one (T,D)@(D,4D) MXU pass.  Columns [3D:4D] of the
    # result (h @ Wproj) are unused but free: a sub-128-lane result would occupy the same
    # padded 128-lane output anyway.
    w_attn = w_attn_ref[...]                                       # (D, 4D)
    qkvp = jnp.dot(h, w_attn, preferred_element_type=jnp.float32)  # (T, 4D)

    # ---- per-sequence causal additive bias (T,T): 4 cheap ops, cheaper than an extra DMA.
    row = jax.lax.broadcasted_iota(jnp.int32, (T, T), 0)
    col = jax.lax.broadcasted_iota(jnp.int32, (T, T), 1)
    bias = jnp.where(col <= row, 0.0, NEG_BIG).astype(jnp.float32)

    scale = 1.0 / math.sqrt(head_dim)
    attn = jnp.zeros((T, D), jnp.float32)

    for hh in range(n_heads):            # unrolled at trace time (n_heads = 4)
        lo = hh * head_dim
        hi = lo + head_dim
        q = qkvp[:, lo:hi] * scale                     # (T, hd)  static 8-lane slices
        k = qkvp[:, D + lo:D + hi]
        v = qkvp[:, 2 * D + lo:2 * D + hi]
        s = jax.lax.dot_general(q, k, (((1,), (1,)), ((), ())),
                                preferred_element_type=jnp.float32) + bias
        m = jnp.max(s, axis=-1, keepdims=True)
        p = jnp.exp(s - m)
        l = jnp.sum(p, axis=-1, keepdims=True)
        p = p * pl.reciprocal(l, approx=True)          # EUP slot, off the VPU path
        ctx = jnp.dot(p, v, preferred_element_type=jnp.float32)    # (T, hd)
        # accumulate per-head output projection (== concat(heads) @ Wproj); rows are
        # sublane-aligned slices of the fused attention-weight tile.
        wproj_h = w_attn[lo:hi, 3 * D:4 * D]                        # (hd, D)
        attn = attn + jnp.dot(ctx, wproj_h, preferred_element_type=jnp.float32)

    # output-projection bias + residual (dropout is identity in eval mode)
    x1 = x + attn + bproj

    # ---- LayerNorm 2 + FeedForward: Linear -> GELU(tanh) -> Linear ----
    h2 = _layernorm(x1, ln2_w, ln2_b)
    f1 = (jnp.dot(h2, w1b1_ref[0:D, :], preferred_element_type=jnp.float32)
          + w1b1_ref[D:D + 1, :])                                   # (T, 4D)
    c = math.sqrt(2.0 / math.pi)
    g = 0.5 * f1 * (1.0 + jnp.tanh(c * (f1 + 0.044715 * f1 * f1 * f1)))
    f2 = jnp.dot(g, w2_ref[...], preferred_element_type=jnp.float32) + b2

    o_ref[...] = (x1 + f2).astype(o_ref.dtype)


def transformer_block(x, params):
    """x: (B, T, D) float32. params: dict of weights (see _init_params)."""
    B, T, D = x.shape
    H, hd = N_HEADS, HEAD_DIM

    # ---- one-time wrapper-side packing (layout plumbing, would be the stored layout) ----
    # six (1,D) vectors -> one (8,D) tile (one DMA instead of six)
    vecs = jnp.concatenate(
        [params["ln1_w"], params["ln1_b"], params["ln2_w"], params["ln2_b"],
         params["bproj"], params["b2"], jnp.zeros((2, D), jnp.float32)], axis=0)
    # fused attention weights: [Wqkv | Wproj] -> (D, 4D) = exactly one 128-lane tile
    w_attn = jnp.concatenate([params["wqkv"], params["wproj"]], axis=1)
    # W1 with b1 stacked as an extra row -> (D+1, 4D)
    w1b1 = jnp.concatenate([params["w1"], params["b1"]], axis=0)

    x2 = x.reshape(B * T, D)          # free (contiguous) reshape

    kernel = functools.partial(transformer_block_kernel, seq_len=T, n_heads=H,
                               head_dim=hd, emb_dim=D)

    grid_spec = pltpu.PrefetchScalarGridSpec(
        num_scalar_prefetch=0,
        grid=(B,),                                       # one sequence per grid step
        in_specs=[
            pl.BlockSpec((T, D), lambda b: (b, 0)),          # activations: per-sequence block
            pl.BlockSpec((8, D), lambda b: (0, 0)),          # packed vectors (invariant)
            pl.BlockSpec((D, 4 * D), lambda b: (0, 0)),      # fused Wqkv|Wproj (invariant)
            pl.BlockSpec((D + 1, 4 * D), lambda b: (0, 0)),  # W1+b1 (invariant)
            pl.BlockSpec((4 * D, D), lambda b: (0, 0)),      # W2 (invariant)
        ],
        out_specs=pl.BlockSpec((T, D), lambda b: (b, 0)),
    )

    out2 = pl.pallas_call(
        kernel,
        out_shape=jax.ShapeDtypeStruct((B * T, D), x.dtype),
        grid_spec=grid_spec,
        compiler_params=pltpu.CompilerParams(
            dimension_semantics=("parallel",)),          # both v7x TensorCores usable
    )(x2, vecs, w_attn, w1b1, params["w2"])

    return out2.reshape(B, T, D)


def _init_params(key):
    ks = jax.random.split(key, 11)
    scale = 0.02
    D, Hd = EMB_DIM, HIDDEN
    return {
        # LN params perturbed away from (1, 0) so the test actually exercises them.
        "ln1_w": 1.0 + 0.1 * jax.random.normal(ks[7], (1, D), jnp.float32),
        "ln1_b": 0.1 * jax.random.normal(ks[8], (1, D), jnp.float32),
        "ln2_w": 1.0 + 0.1 * jax.random.normal(ks[9], (1, D), jnp.float32),
        "ln2_b": 0.1 * jax.random.normal(ks[10], (1, D), jnp.float32),
        "wqkv": scale * jax.random.normal(ks[0], (D, 3 * D), jnp.float32),  # (in, out), no bias
        "wproj": scale * jax.random.normal(ks[1], (D, D), jnp.float32),
        "bproj": scale * jax.random.normal(ks[2], (1, D), jnp.float32),
        "w1": scale * jax.random.normal(ks[3], (D, Hd), jnp.float32),
        "b1": scale * jax.random.normal(ks[4], (1, Hd), jnp.float32),
        "w2": scale * jax.random.normal(ks[5], (Hd, D), jnp.float32),
        "b2": scale * jax.random.normal(ks[6], (1, D), jnp.float32),
    }


def _reference(x, p):
    """Pure-JAX reference mirroring the PyTorch forward (eval mode)."""
    def ln(v, w, b):
        mu = v.mean(-1, keepdims=True)
        var = ((v - mu) ** 2).mean(-1, keepdims=True)
        return (v - mu) / jnp.sqrt(var + LN_EPS) * w[0] + b[0]

    B, T, D = x.shape
    h = ln(x, p["ln1_w"], p["ln1_b"])
    qkv = h @ p["wqkv"]
    qkv = qkv.reshape(B, T, 3, N_HEADS, HEAD_DIM).transpose(2, 0, 3, 1, 4)
    q, k, v = qkv[0], qkv[1], qkv[2]
    s = jnp.einsum("bhqd,bhkd->bhqk", q, k) / math.sqrt(HEAD_DIM)
    mask = jnp.tril(jnp.ones((T, T), bool))
    s = jnp.where(mask, s, -jnp.inf)
    a = jax.nn.softmax(s, axis=-1)
    ctx = jnp.einsum("bhqk,bhkd->bhqd", a, v).transpose(0, 2, 1, 3).reshape(B, T, D)
    x1 = x + ctx @ p["wproj"] + p["bproj"][0]
    h2 = ln(x1, p["ln2_w"], p["ln2_b"])
    f1 = h2 @ p["w1"] + p["b1"][0]
    c = math.sqrt(2.0 / math.pi)
    g = 0.5 * f1 * (1.0 + jnp.tanh(c * (f1 + 0.044715 * f1 ** 3)))
    return x1 + g @ p["w2"] + p["b2"][0]


if __name__ == "__main__":
    key = jax.random.PRNGKey(0)
    kx, kp = jax.random.split(key)
    x = jax.random.normal(kx, (BATCH, SEQ, EMB_DIM), jnp.float32)
    params = _init_params(kp)

    out = transformer_block(x, params)
    out = jax.block_until_ready(out)

    ref = _reference(x, params)
    # tolerance 2e-3 to accommodate the EUP approximate reciprocal used for the softmax
    # denominator; all other math is exact f32.
    np.testing.assert_allclose(np.asarray(out), np.asarray(ref),
                               rtol=2e-3, atol=2e-3)
    print("KERNEL_OK")
</pallas_src>

<mosaic_0001>
module attributes {stable_mosaic.version = 11 : i64} {
  func.func @transformer_block_kernel(%arg0: i32, %arg1: memref<8x32xf32, #tpu.memory_space<vmem>>, %arg2: memref<8x32xf32, #tpu.memory_space<vmem>>, %arg3: memref<32x128xf32, #tpu.memory_space<vmem>>, %arg4: memref<33x128xf32, #tpu.memory_space<vmem>>, %arg5: memref<128x32xf32, #tpu.memory_space<vmem>>, %arg6: memref<8x32xf32, #tpu.memory_space<vmem>>) attributes {dimension_semantics = [#tpu.dimension_semantics<parallel>], iteration_bounds = array<i64: 2>, scalar_prefetch = 0 : i64, scratch_operands = 0 : i64, tpu.core_type = #tpu.core_type<tc>, window_params = [{transform_indices = @transform_0, window_bounds = array<i64: 8, 32>}, {pipeline_mode = #tpu.pipeline_mode<synchronous>, transform_indices = @transform_1, window_bounds = array<i64: 8, 32>}, {pipeline_mode = #tpu.pipeline_mode<synchronous>, transform_indices = @transform_2, window_bounds = array<i64: 32, 128>}, {pipeline_mode = #tpu.pipeline_mode<synchronous>, transform_indices = @transform_3, window_bounds = array<i64: 33, 128>}, {pipeline_mode = #tpu.pipeline_mode<synchronous>, transform_indices = @transform_4, window_bounds = array<i64: 128, 32>}, {transform_indices = @transform_5, window_bounds = array<i64: 8, 32>}]} {
    %c0 = arith.constant 0 : index
    %c0_0 = arith.constant 0 : index
    %0 = vector.load %arg1[%c0, %c0_0] : memref<8x32xf32, #tpu.memory_space<vmem>>, vector<8x32xf32>
    %c0_1 = arith.constant 0 : index
    %c0_2 = arith.constant 0 : index
    %1 = vector.load %arg2[%c0_1, %c0_2] : memref<8x32xf32, #tpu.memory_space<vmem>>, vector<8x32xf32>
    %2 = vector.extract_strided_slice %1 {offsets = [0, 0], sizes = [1, 32], strides = [1, 1]} : vector<8x32xf32> to vector<1x32xf32>
    %3 = vector.extract_strided_slice %1 {offsets = [1, 0], sizes = [1, 32], strides = [1, 1]} : vector<8x32xf32> to vector<1x32xf32>
    %4 = vector.extract_strided_slice %1 {offsets = [2, 0], sizes = [1, 32], strides = [1, 1]} : vector<8x32xf32> to vector<1x32xf32>
    %5 = vector.extract_strided_slice %1 {offsets = [3, 0], sizes = [1, 32], strides = [1, 1]} : vector<8x32xf32> to vector<1x32xf32>
    %6 = vector.extract_strided_slice %1 {offsets = [4, 0], sizes = [1, 32], strides = [1, 1]} : vector<8x32xf32> to vector<1x32xf32>
    %7 = vector.extract_strided_slice %1 {offsets = [5, 0], sizes = [1, 32], strides = [1, 1]} : vector<8x32xf32> to vector<1x32xf32>
    %cst = arith.constant dense<0.000000e+00> : vector<8xf32>
    %8 = vector.multi_reduction <add>, %0, %cst [1] : vector<8x32xf32> to vector<8xf32>
    %9 = vector.shape_cast %8 : vector<8xf32> to vector<8x1xf32>
    %cst_3 = arith.constant 3.200000e+01 : f32
    %10 = vector.broadcast %cst_3 : f32 to vector<8x1xf32>
    %11 = arith.divf %9, %10 : vector<8x1xf32>
    %12 = vector.broadcast %11 : vector<8x1xf32> to vector<8x32xf32>
    %13 = arith.subf %0, %12 : vector<8x32xf32>
    %14 = arith.mulf %13, %13 : vector<8x32xf32>
    %cst_4 = arith.constant dense<0.000000e+00> : vector<8xf32>
    %15 = vector.multi_reduction <add>, %14, %cst_4 [1] : vector<8x32xf32> to vector<8xf32>
    %16 = vector.shape_cast %15 : vector<8xf32> to vector<8x1xf32>
    %cst_5 = arith.constant 3.200000e+01 : f32
    %17 = vector.broadcast %cst_5 : f32 to vector<8x1xf32>
    %18 = arith.divf %16, %17 : vector<8x1xf32>
    %cst_6 = arith.constant 9.99999974E-6 : f32
    %19 = vector.broadcast %cst_6 : f32 to vector<8x1xf32>
    %20 = arith.addf %18, %19 : vector<8x1xf32>
    %21 = math.rsqrt %20 : vector<8x1xf32>
    %22 = vector.broadcast %21 : vector<8x1xf32> to vector<8x32xf32>
    %23 = arith.mulf %13, %22 : vector<8x32xf32>
    %24 = vector.broadcast %2 : vector<1x32xf32> to vector<8x32xf32>
    %25 = arith.mulf %23, %24 : vector<8x32xf32>
    %26 = vector.broadcast %3 : vector<1x32xf32> to vector<8x32xf32>
    %27 = arith.addf %25, %26 : vector<8x32xf32>
    %c0_7 = arith.constant 0 : index
    %c0_8 = arith.constant 0 : index
    %28 = vector.load %arg3[%c0_7, %c0_8] : memref<32x128xf32, #tpu.memory_space<vmem>>, vector<32x128xf32>
    %cst_9 = arith.constant dense<0.000000e+00> : vector<8x128xf32>
    %29 = tpu.matmul %27, %28, %cst_9 {dimension_numbers = #tpu.dot_dimension_numbers<[1], [0], [0], [1], [0, 0, 1, 1], [], []>} : vector<8x32xf32>, vector<32x128xf32>, vector<8x128xf32> -> vector<8x128xf32>
    %30 = tpu.iota {dimensions = array<i32: 0>} : vector<8x8xi32>
    %31 = tpu.iota {dimensions = array<i32: 1>} : vector<8x8xi32>
    %32 = arith.cmpi sle, %31, %30 : vector<8x8xi32>
    %cst_10 = arith.constant 0.000000e+00 : f32
    %cst_11 = arith.constant -1.000000e+30 : f32
    %33 = vector.broadcast %cst_10 : f32 to vector<8x8xf32>
    %34 = vector.broadcast %cst_11 : f32 to vector<8x8xf32>
    %35 = arith.select %32, %33, %34 : vector<8x8xi1>, vector<8x8xf32>
    %cst_12 = arith.constant 0.000000e+00 : f32
    %36 = vector.broadcast %cst_12 : f32 to vector<8x32xf32>
    %37 = vector.extract_strided_slice %29 {offsets = [0, 0], sizes = [8, 8], strides = [1, 1]} : vector<8x128xf32> to vector<8x8xf32>
    %cst_13 = arith.constant 0.353553385 : f32
    %38 = vector.broadcast %cst_13 : f32 to vector<8x8xf32>
    %39 = arith.mulf %37, %38 : vector<8x8xf32>
    %40 = vector.extract_strided_slice %29 {offsets = [0, 32], sizes = [8, 8], strides = [1, 1]} : vector<8x128xf32> to vector<8x8xf32>
    %41 = vector.extract_strided_slice %29 {offsets = [0, 64], sizes = [8, 8], strides = [1, 1]} : vector<8x128xf32> to vector<8x8xf32>
    %cst_14 = arith.constant dense<0.000000e+00> : vector<8x8xf32>
    %42 = tpu.matmul %39, %40, %cst_14 {dimension_numbers = #tpu.dot_dimension_numbers<[1], [1], [0], [0], [0, 0, 1, 0], [], []>} : vector<8x8xf32>, vector<8x8xf32>, vector<8x8xf32> -> vector<8x8xf32>
    %43 = arith.addf %42, %35 : vector<8x8xf32>
    %cst_15 = arith.constant dense<0xFF800000> : vector<8xf32>
    %44 = vector.multi_reduction <maximumf>, %43, %cst_15 [1] : vector<8x8xf32> to vector<8xf32>
    %45 = vector.shape_cast %44 : vector<8xf32> to vector<8x1xf32>
    %46 = vector.broadcast %45 : vector<8x1xf32> to vector<8x8xf32>
    %47 = arith.subf %43, %46 : vector<8x8xf32>
    %48 = math.exp %47 : vector<8x8xf32>
    %cst_16 = arith.constant dense<0.000000e+00> : vector<8xf32>
    %49 = vector.multi_reduction <add>, %48, %cst_16 [1] : vector<8x8xf32> to vector<8xf32>
    %50 = vector.shape_cast %49 : vector<8xf32> to vector<8x1xf32>
    %51 = tpu.reciprocal %50 {approx = true} : vector<8x1xf32> -> vector<8x1xf32>
    %52 = vector.broadcast %51 : vector<8x1xf32> to vector<8x8xf32>
    %53 = arith.mulf %48, %52 : vector<8x8xf32>
    %cst_17 = arith.constant dense<0.000000e+00> : vector<8x8xf32>
    %54 = tpu.matmul %53, %41, %cst_17 {dimension_numbers = #tpu.dot_dimension_numbers<[1], [0], [0], [1], [0, 0, 1, 1], [], []>} : vector<8x8xf32>, vector<8x8xf32>, vector<8x8xf32> -> vector<8x8xf32>
    %55 = vector.extract_strided_slice %28 {offsets = [0, 96], sizes = [8, 32], strides = [1, 1]} : vector<32x128xf32> to vector<8x32xf32>
    %cst_18 = arith.constant dense<0.000000e+00> : vector<8x32xf32>
    %56 = tpu.matmul %54, %55, %cst_18 {dimension_numbers = #tpu.dot_dimension_numbers<[1], [0], [0], [1], [0, 0, 1, 1], [], []>} : vector<8x8xf32>, vector<8x32xf32>, vector<8x32xf32> -> vector<8x32xf32>
    %57 = arith.addf %36, %56 : vector<8x32xf32>
    %58 = vector.extract_strided_slice %29 {offsets = [0, 8], sizes = [8, 8], strides = [1, 1]} : vector<8x128xf32> to vector<8x8xf32>
    %cst_19 = arith.constant 0.353553385 : f32
    %59 = vector.broadcast %cst_19 : f32 to vector<8x8xf32>
    %60 = arith.mulf %58, %59 : vector<8x8xf32>
    %61 = vector.extract_strided_slice %29 {offsets = [0, 40], sizes = [8, 8], strides = [1, 1]} : vector<8x128xf32> to vector<8x8xf32>
    %62 = vector.extract_strided_slice %29 {offsets = [0, 72], sizes = [8, 8], strides = [1, 1]} : vector<8x128xf32> to vector<8x8xf32>
    %cst_20 = arith.constant dense<0.000000e+00> : vector<8x8xf32>
    %63 = tpu.matmul %60, %61, %cst_20 {dimension_numbers = #tpu.dot_dimension_numbers<[1], [1], [0], [0], [0, 0, 1, 0], [], []>} : vector<8x8xf32>, vector<8x8xf32>, vector<8x8xf32> -> vector<8x8xf32>
    %64 = arith.addf %63, %35 : vector<8x8xf32>
    %cst_21 = arith.constant dense<0xFF800000> : vector<8xf32>
    %65 = vector.multi_reduction <maximumf>, %64, %cst_21 [1] : vector<8x8xf32> to vector<8xf32>
    %66 = vector.shape_cast %65 : vector<8xf32> to vector<8x1xf32>
    %67 = vector.broadcast %66 : vector<8x1xf32> to vector<8x8xf32>
    %68 = arith.subf %64, %67 : vector<8x8xf32>
    %69 = math.exp %68 : vector<8x8xf32>
    %cst_22 = arith.constant dense<0.000000e+00> : vector<8xf32>
    %70 = vector.multi_reduction <add>, %69, %cst_22 [1] : vector<8x8xf32> to vector<8xf32>
    %71 = vector.shape_cast %70 : vector<8xf32> to vector<8x1xf32>
    %72 = tpu.reciprocal %71 {approx = true} : vector<8x1xf32> -> vector<8x1xf32>
    %73 = vector.broadcast %72 : vector<8x1xf32> to vector<8x8xf32>
    %74 = arith.mulf %69, %73 : vector<8x8xf32>
    %cst_23 = arith.constant dense<0.000000e+00> : vector<8x8xf32>
    %75 = tpu.matmul %74, %62, %cst_23 {dimension_numbers = #tpu.dot_dimension_numbers<[1], [0], [0], [1], [0, 0, 1, 1], [], []>} : vector<8x8xf32>, vector<8x8xf32>, vector<8x8xf32> -> vector<8x8xf32>
    %76 = vector.extract_strided_slice %28 {offsets = [8, 96], sizes = [8, 32], strides = [1, 1]} : vector<32x128xf32> to vector<8x32xf32>
    %cst_24 = arith.constant dense<0.000000e+00> : vector<8x32xf32>
    %77 = tpu.matmul %75, %76, %cst_24 {dimension_numbers = #tpu.dot_dimension_numbers<[1], [0], [0], [1], [0, 0, 1, 1], [], []>} : vector<8x8xf32>, vector<8x32xf32>, vector<8x32xf32> -> vector<8x32xf32>
    %78 = arith.addf %57, %77 : vector<8x32xf32>
    %79 = vector.extract_strided_slice %29 {offsets = [0, 16], sizes = [8, 8], strides = [1, 1]} : vector<8x128xf32> to vector<8x8xf32>
    %cst_25 = arith.constant 0.353553385 : f32
    %80 = vector.broadcast %cst_25 : f32 to vector<8x8xf32>
    %81 = arith.mulf %79, %80 : vector<8x8xf32>
    %82 = vector.extract_strided_slice %29 {offsets = [0, 48], sizes = [8, 8], strides = [1, 1]} : vector<8x128xf32> to vector<8x8xf32>
    %83 = vector.extract_strided_slice %29 {offsets = [0, 80], sizes = [8, 8], strides = [1, 1]} : vector<8x128xf32> to vector<8x8xf32>
    %cst_26 = arith.constant dense<0.000000e+00> : vector<8x8xf32>
    %84 = tpu.matmul %81, %82, %cst_26 {dimension_numbers = #tpu.dot_dimension_numbers<[1], [1], [0], [0], [0, 0, 1, 0], [], []>} : vector<8x8xf32>, vector<8x8xf32>, vector<8x8xf32> -> vector<8x8xf32>
    %85 = arith.addf %84, %35 : vector<8x8xf32>
    %cst_27 = arith.constant dense<0xFF800000> : vector<8xf32>
    %86 = vector.multi_reduction <maximumf>, %85, %cst_27 [1] : vector<8x8xf32> to vector<8xf32>
    %87 = vector.shape_cast %86 : vector<8xf32> to vector<8x1xf32>
    %88 = vector.broadcast %87 : vector<8x1xf32> to vector<8x8xf32>
    %89 = arith.subf %85, %88 : vector<8x8xf32>
    %90 = math.exp %89 : vector<8x8xf32>
    %cst_28 = arith.constant dense<0.000000e+00> : vector<8xf32>
    %91 = vector.multi_reduction <add>, %90, %cst_28 [1] : vector<8x8xf32> to vector<8xf32>
    %92 = vector.shape_cast %91 : vector<8xf32> to vector<8x1xf32>
    %93 = tpu.reciprocal %92 {approx = true} : vector<8x1xf32> -> vector<8x1xf32>
    %94 = vector.broadcast %93 : vector<8x1xf32> to vector<8x8xf32>
    %95 = arith.mulf %90, %94 : vector<8x8xf32>
    %cst_29 = arith.constant dense<0.000000e+00> : vector<8x8xf32>
    %96 = tpu.matmul %95, %83, %cst_29 {dimension_numbers = #tpu.dot_dimension_numbers<[1], [0], [0], [1], [0, 0, 1, 1], [], []>} : vector<8x8xf32>, vector<8x8xf32>, vector<8x8xf32> -> vector<8x8xf32>
    %97 = vector.extract_strided_slice %28 {offsets = [16, 96], sizes = [8, 32], strides = [1, 1]} : vector<32x128xf32> to vector<8x32xf32>
    %cst_30 = arith.constant dense<0.000000e+00> : vector<8x32xf32>
    %98 = tpu.matmul %96, %97, %cst_30 {dimension_numbers = #tpu.dot_dimension_numbers<[1], [0], [0], [1], [0, 0, 1, 1], [], []>} : vector<8x8xf32>, vector<8x32xf32>, vector<8x32xf32> -> vector<8x32xf32>
    %99 = arith.addf %78, %98 : vector<8x32xf32>
    %100 = vector.extract_strided_slice %29 {offsets = [0, 24], sizes = [8, 8], strides = [1, 1]} : vector<8x128xf32> to vector<8x8xf32>
    %cst_31 = arith.constant 0.353553385 : f32
    %101 = vector.broadcast %cst_31 : f32 to vector<8x8xf32>
    %102 = arith.mulf %100, %101 : vector<8x8xf32>
    %103 = vector.extract_strided_slice %29 {offsets = [0, 56], sizes = [8, 8], strides = [1, 1]} : vector<8x128xf32> to vector<8x8xf32>
    %104 = vector.extract_strided_slice %29 {offsets = [0, 88], sizes = [8, 8], strides = [1, 1]} : vector<8x128xf32> to vector<8x8xf32>
    %cst_32 = arith.constant dense<0.000000e+00> : vector<8x8xf32>
    %105 = tpu.matmul %102, %103, %cst_32 {dimension_numbers = #tpu.dot_dimension_numbers<[1], [1], [0], [0], [0, 0, 1, 0], [], []>} : vector<8x8xf32>, vector<8x8xf32>, vector<8x8xf32> -> vector<8x8xf32>
    %106 = arith.addf %105, %35 : vector<8x8xf32>
    %cst_33 = arith.constant dense<0xFF800000> : vector<8xf32>
    %107 = vector.multi_reduction <maximumf>, %106, %cst_33 [1] : vector<8x8xf32> to vector<8xf32>
    %108 = vector.shape_cast %107 : vector<8xf32> to vector<8x1xf32>
    %109 = vector.broadcast %108 : vector<8x1xf32> to vector<8x8xf32>
    %110 = arith.subf %106, %109 : vector<8x8xf32>
    %111 = math.exp %110 : vector<8x8xf32>
    %cst_34 = arith.constant dense<0.000000e+00> : vector<8xf32>
    %112 = vector.multi_reduction <add>, %111, %cst_34 [1] : vector<8x8xf32> to vector<8xf32>
    %113 = vector.shape_cast %112 : vector<8xf32> to vector<8x1xf32>
    %114 = tpu.reciprocal %113 {approx = true} : vector<8x1xf32> -> vector<8x1xf32>
    %115 = vector.broadcast %114 : vector<8x1xf32> to vector<8x8xf32>
    %116 = arith.mulf %111, %115 : vector<8x8xf32>
    %cst_35 = arith.constant dense<0.000000e+00> : vector<8x8xf32>
    %117 = tpu.matmul %116, %104, %cst_35 {dimension_numbers = #tpu.dot_dimension_numbers<[1], [0], [0], [1], [0, 0, 1, 1], [], []>} : vector<8x8xf32>, vector<8x8xf32>, vector<8x8xf32> -> vector<8x8xf32>
    %118 = vector.extract_strided_slice %28 {offsets = [24, 96], sizes = [8, 32], strides = [1, 1]} : vector<32x128xf32> to vector<8x32xf32>
    %cst_36 = arith.constant dense<0.000000e+00> : vector<8x32xf32>
    %119 = tpu.matmul %117, %118, %cst_36 {dimension_numbers = #tpu.dot_dimension_numbers<[1], [0], [0], [1], [0, 0, 1, 1], [], []>} : vector<8x8xf32>, vector<8x32xf32>, vector<8x32xf32> -> vector<8x32xf32>
    %120 = arith.addf %99, %119 : vector<8x32xf32>
    %121 = arith.addf %0, %120 : vector<8x32xf32>
    %122 = vector.broadcast %6 : vector<1x32xf32> to vector<8x32xf32>
    %123 = arith.addf %121, %122 : vector<8x32xf32>
    %cst_37 = arith.constant dense<0.000000e+00> : vector<8xf32>
    %124 = vector.multi_reduction <add>, %123, %cst_37 [1] : vector<8x32xf32> to vector<8xf32>
    %125 = vector.shape_cast %124 : vector<8xf32> to vector<8x1xf32>
    %cst_38 = arith.constant 3.200000e+01 : f32
    %126 = vector.broadcast %cst_38 : f32 to vector<8x1xf32>
    %127 = arith.divf %125, %126 : vector<8x1xf32>
    %128 = vector.broadcast %127 : vector<8x1xf32> to vector<8x32xf32>
    %129 = arith.subf %123, %128 : vector<8x32xf32>
    %130 = arith.mulf %129, %129 : vector<8x32xf32>
    %cst_39 = arith.constant dense<0.000000e+00> : vector<8xf32>
    %131 = vector.multi_reduction <add>, %130, %cst_39 [1] : vector<8x32xf32> to vector<8xf32>
    %132 = vector.shape_cast %131 : vector<8xf32> to vector<8x1xf32>
    %cst_40 = arith.constant 3.200000e+01 : f32
    %133 = vector.broadcast %cst_40 : f32 to vector<8x1xf32>
    %134 = arith.divf %132, %133 : vector<8x1xf32>
    %cst_41 = arith.constant 9.99999974E-6 : f32
    %135 = vector.broadcast %cst_41 : f32 to vector<8x1xf32>
    %136 = arith.addf %134, %135 : vector<8x1xf32>
    %137 = math.rsqrt %136 : vector<8x1xf32>
    %138 = vector.broadcast %137 : vector<8x1xf32> to vector<8x32xf32>
    %139 = arith.mulf %129, %138 : vector<8x32xf32>
    %140 = vector.broadcast %4 : vector<1x32xf32> to vector<8x32xf32>
    %141 = arith.mulf %139, %140 : vector<8x32xf32>
    %142 = vector.broadcast %5 : vector<1x32xf32> to vector<8x32xf32>
    %143 = arith.addf %141, %142 : vector<8x32xf32>
    %c0_42 = arith.constant 0 : index
    %c0_43 = arith.constant 0 : index
    %144 = vector.load %arg4[%c0_42, %c0_43] : memref<33x128xf32, #tpu.memory_space<vmem>>, vector<32x128xf32>
    %cst_44 = arith.constant dense<0.000000e+00> : vector<8x128xf32>
    %145 = tpu.matmul %143, %144, %cst_44 {dimension_numbers = #tpu.dot_dimension_numbers<[1], [0], [0], [1], [0, 0, 1, 1], [], []>} : vector<8x32xf32>, vector<32x128xf32>, vector<8x128xf32> -> vector<8x128xf32>
    %c32 = arith.constant 32 : index
    %c0_45 = arith.constant 0 : index
    %146 = vector.load %arg4[%c32, %c0_45] : memref<33x128xf32, #tpu.memory_space<vmem>>, vector<1x128xf32>
    %147 = vector.broadcast %146 : vector<1x128xf32> to vector<8x128xf32>
    %148 = arith.addf %145, %147 : vector<8x128xf32>
    %cst_46 = arith.constant 5.000000e-01 : f32
    %149 = vector.broadcast %cst_46 : f32 to vector<8x128xf32>
    %150 = arith.mulf %149, %148 : vector<8x128xf32>
    %cst_47 = arith.constant 4.471500e-02 : f32
    %151 = vector.broadcast %cst_47 : f32 to vector<8x128xf32>
    %152 = arith.mulf %151, %148 : vector<8x128xf32>
    %153 = arith.mulf %152, %148 : vector<8x128xf32>
    %154 = arith.mulf %153, %148 : vector<8x128xf32>
    %155 = arith.addf %148, %154 : vector<8x128xf32>
    %cst_48 = arith.constant 0.797884583 : f32
    %156 = vector.broadcast %cst_48 : f32 to vector<8x128xf32>
    %157 = arith.mulf %156, %155 : vector<8x128xf32>
    %158 = math.tanh %157 : vector<8x128xf32>
    %cst_49 = arith.constant 1.000000e+00 : f32
    %159 = vector.broadcast %cst_49 : f32 to vector<8x128xf32>
    %160 = arith.addf %159, %158 : vector<8x128xf32>
    %161 = arith.mulf %150, %160 : vector<8x128xf32>
    %c0_50 = arith.constant 0 : index
    %c0_51 = arith.constant 0 : index
    %162 = vector.load %arg5[%c0_50, %c0_51] : memref<128x32xf32, #tpu.memory_space<vmem>>, vector<128x32xf32>
    %cst_52 = arith.constant dense<0.000000e+00> : vector<8x32xf32>
    %163 = tpu.matmul %161, %162, %cst_52 {dimension_numbers = #tpu.dot_dimension_numbers<[1], [0], [0], [1], [0, 0, 1, 1], [], []>} : vector<8x128xf32>, vector<128x32xf32>, vector<8x32xf32> -> vector<8x32xf32>
    %164 = vector.broadcast %7 : vector<1x32xf32> to vector<8x32xf32>
    %165 = arith.addf %163, %164 : vector<8x32xf32>
    %166 = arith.addf %123, %165 : vector<8x32xf32>
    %c0_53 = arith.constant 0 : index
    %c0_54 = arith.constant 0 : index
    %167 = vector.load %arg6[%c0_53, %c0_54] : memref<8x32xf32, #tpu.memory_space<vmem>>, vector<8x32xf32>
    tpu.vector_store %arg6[%c0_53, %c0_54], %166 {strides = array<i32>} : memref<8x32xf32, #tpu.memory_space<vmem>>, vector<8x32xf32>,
    return
  }
  func.func @transform_0(%arg0: i32) -> (i32, i32) {
    %c0_i32 = arith.constant 0 : i32
    %c0_i32_0 = arith.constant 0 : i32
    return %arg0, %c0_i32 : i32, i32
  }
  func.func @transform_1(%arg0: i32) -> (i32, i32) {
    %c0_i32 = arith.constant 0 : i32
    %c0_i32_0 = arith.constant 0 : i32
    %c0_i32_1 = arith.constant 0 : i32
    return %c0_i32, %c0_i32_0 : i32, i32
  }
  func.func @transform_2(%arg0: i32) -> (i32, i32) {
    %c0_i32 = arith.constant 0 : i32
    %c0_i32_0 = arith.constant 0 : i32
    %c0_i32_1 = arith.constant 0 : i32
    return %c0_i32, %c0_i32_0 : i32, i32
  }
  func.func @transform_3(%arg0: i32) -> (i32, i32) {
    %c0_i32 = arith.constant 0 : i32
    %c0_i32_0 = arith.constant 0 : i32
    %c0_i32_1 = arith.constant 0 : i32
    return %c0_i32, %c0_i32_0 : i32, i32
  }
  func.func @transform_4(%arg0: i32) -> (i32, i32) {
    %c0_i32 = arith.constant 0 : i32
    %c0_i32_0 = arith.constant 0 : i32
    %c0_i32_1 = arith.constant 0 : i32
    return %c0_i32, %c0_i32_0 : i32, i32
  }
  func.func @transform_5(%arg0: i32) -> (i32, i32) {
    %c0_i32 = arith.constant 0 : i32
    %c0_i32_0 = arith.constant 0 : i32
    return %arg0, %c0_i32 : i32, i32
  }
}

</mosaic_0001>

<llo_original>
// kernel: tpu_custom_call.1
$region0: #{tpu_custom_call.1}
  #allocation0 [shape = 'u32[]', space=smem, size = 0x4, offset = 0x4, fixed_abs, tag = 'smem constant byte address 0x4 - core index']
  #allocation1 [shape = 'u32[72,128]{1,0:T(1,128)}', space=vmem, size = 0x9000, scoped, tag = 'internal scratch']
  %s0 = inlined_call_operand.vmem [shape: f32[16,32], index: 0, kind: input, shape index: {}]
  %s1 = inlined_call_operand.vmem [shape: f32[8,32], index: 1, kind: input, shape index: {}]
  %s2 = inlined_call_operand.vmem [shape: f32[32,128], index: 2, kind: input, shape index: {}]
  %s3 = inlined_call_operand.vmem [shape: f32[33,128], index: 3, kind: input, shape index: {}]
  %s4 = inlined_call_operand.vmem [shape: f32[128,32], index: 4, kind: input, shape index: {}]
  %s5 = inlined_call_operand.hbm [shape: f32[16,32], index: 5, kind: output, shape index: {}]
  %s6 = sld [smem:[#allocation0]]
  $region53: #{tpu_custom_call.1} parent=0
    _
  %s8 = ssub.s32 1, %s6
  %s9 = scalar_select 0, %s8, %s6
  $region1: #{tpu_custom_call.1} parent=0
    #allocation2 [shape = 'u8[8192]{0}', space=vmem, size = 0x2000, scoped, tag = 'output window, operand 0']
    #allocation3 [shape = 's32[2]{0}', space=sflag, size = 0x8, scoped, tag = 'scoped memory for tpu_custom_call.1']
    %10 = vsyncpa [#allocation3], 0
    %s11 = scalar_lea.sflag [#allocation3], 1
    %12 = vsyncpa %s11, 0
    loop: start=0, step=1, limit=4
    $region2: #{tpu_custom_call.1} parent=1 // loop_pre_header
      _
    $region3: #{tpu_custom_call.1} parent=1 // loop_header
      %s14 = sphi 0, %s18
      %p15 = scmp.ge.s32.totalorder %s14, 4
      %s24 = sphi 0, %s26
      %s27 = sphi 0, %s24
      %s28 = sphi 0, %s27
      %s44 = sphi 0, %s28
      %s48 = sphi 0, %s48
      %s50 = sphi 0, %s48
      %s51 = sphi 0, %s50
      %s65 = sphi 0, %s51
      %s69 = sphi 0, %s69
      %s71 = sphi 0, %s69
      %s72 = sphi 0, %s71
      %s86 = sphi 0, %s72
      %s90 = sphi 0, %s90
      %s92 = sphi 0, %s90
      %s93 = sphi 0, %s92
      %s107 = sphi 0, %s93
      %s111 = sphi 0, %s111
      %s113 = sphi 0, %s111
      %s114 = sphi 0, %s113
      %s128 = sphi 0, %s114
      %s134 = sphi 0, %s136
      %s137 = sphi 0, %s134
      %s138 = sphi 0, %s137
      %s154 = sphi 0, %s138
    $region4: #{tpu_custom_call.1} parent=1 // loop_header_branch
      %17 = sbr.rel (%p15) target = $region8
    $region5: #{tpu_custom_call.1} parent=1 // loop_body
      %s19 = ssub.s32 %s14, 1
      %s20 = ssub.s32 %s14, 2
      %s21 = sadd.s32 %s14, 1
      %s22 = ssub.s32 %s14, %s21
      %p23 = scmp.eq.s32.totalorder %s22, 0
      %s25 = sadd.s32 %s24, 1
      %s26 = scalar_select %p23, %s24, %s25
      %p29 = pneg %p23
      %p30 = scmp.eq.s32.totalorder %s14, 1
      %p31 = por %p29, %p30
      %p32 = scmp.ne.s32.totalorder %s24, %s27
      %p33 = scmp.eq.s32.totalorder %s14, 0
      %p34 = por %p32, %p33
      %p35 = scmp.ne.s32.totalorder %s24, %s27
      %p36 = scmp.eq.s32.totalorder %s19, 1
      %p37 = por %p35, %p36
      %p38 = scmp.ne.s32.totalorder %s27, %s28
      %p39 = scmp.eq.s32.totalorder %s19, 0
      %p40 = por %p38, %p39
      %p41 = scmp.ne.s32.totalorder %s27, %s28
      %p42 = scmp.eq.s32.totalorder %s20, 1
      %p43 = por %p41, %p42
      %p45 = scmp.ne.s32.totalorder %s28, %s44
      %p46 = scmp.eq.s32.totalorder %s20, 0
      %p47 = por %p45, %p46
      %s49 = sadd.s32 %s48, 1
      %p52 = scmp.eq.s32.totalorder %s14, 1
      %p53 = scmp.ne.s32.totalorder %s48, %s50
      %p54 = scmp.eq.s32.totalorder %s14, 0
      %p55 = por %p53, %p54
      %p56 = scmp.ne.s32.totalorder %s48, %s50
      %p57 = scmp.eq.s32.totalorder %s19, 1
      %p58 = por %p56, %p57
      %p59 = scmp.ne.s32.totalorder %s50, %s51
      %p60 = scmp.eq.s32.totalorder %s19, 0
      %p61 = por %p59, %p60
      %p62 = scmp.ne.s32.totalorder %s50, %s51
      %p63 = scmp.eq.s32.totalorder %s20, 1
      %p64 = por %p62, %p63
      %p66 = scmp.ne.s32.totalorder %s51, %s65
      %p67 = scmp.eq.s32.totalorder %s20, 0
      %p68 = por %p66, %p67
      %s70 = sadd.s32 %s69, 1
      %p73 = scmp.eq.s32.totalorder %s14, 1
      %p74 = scmp.ne.s32.totalorder %s69, %s71
      %p75 = scmp.eq.s32.totalorder %s14, 0
      %p76 = por %p74, %p75
      %p77 = scmp.ne.s32.totalorder %s69, %s71
      %p78 = scmp.eq.s32.totalorder %s19, 1
      %p79 = por %p77, %p78
      %p80 = scmp.ne.s32.totalorder %s71, %s72
      %p81 = scmp.eq.s32.totalorder %s19, 0
      %p82 = por %p80, %p81
      %p83 = scmp.ne.s32.totalorder %s71, %s72
      %p84 = scmp.eq.s32.totalorder %s20, 1
      %p85 = por %p83, %p84
      %p87 = scmp.ne.s32.totalorder %s72, %s86
      %p88 = scmp.eq.s32.totalorder %s20, 0
      %p89 = por %p87, %p88
      %s91 = sadd.s32 %s90, 1
      %p94 = scmp.eq.s32.totalorder %s14, 1
      %p95 = scmp.ne.s32.totalorder %s90, %s92
      %p96 = scmp.eq.s32.totalorder %s14, 0
      %p97 = por %p95, %p96
      %p98 = scmp.ne.s32.totalorder %s90, %s92
      %p99 = scmp.eq.s32.totalorder %s19, 1
      %p100 = por %p98, %p99
      %p101 = scmp.ne.s32.totalorder %s92, %s93
      %p102 = scmp.eq.s32.totalorder %s19, 0
      %p103 = por %p101, %p102
      %p104 = scmp.ne.s32.totalorder %s92, %s93
      %p105 = scmp.eq.s32.totalorder %s20, 1
      %p106 = por %p104, %p105
      %p108 = scmp.ne.s32.totalorder %s93, %s107
      %p109 = scmp.eq.s32.totalorder %s20, 0
      %p110 = por %p108, %p109
      %s112 = sadd.s32 %s111, 1
      %p115 = scmp.eq.s32.totalorder %s14, 1
      %p116 = scmp.ne.s32.totalorder %s111, %s113
      %p117 = scmp.eq.s32.totalorder %s14, 0
      %p118 = por %p116, %p117
      %p119 = scmp.ne.s32.totalorder %s111, %s113
      %p120 = scmp.eq.s32.totalorder %s19, 1
      %p121 = por %p119, %p120
      %p122 = scmp.ne.s32.totalorder %s113, %s114
      %p123 = scmp.eq.s32.totalorder %s19, 0
      %p124 = por %p122, %p123
      %p125 = scmp.ne.s32.totalorder %s113, %s114
      %p126 = scmp.eq.s32.totalorder %s20, 1
      %p127 = por %p125, %p126
      %p129 = scmp.ne.s32.totalorder %s114, %s128
      %p130 = scmp.eq.s32.totalorder %s20, 0
      %p131 = por %p129, %p130
      %s132 = ssub.s32 %s14, %s21
      %p133 = scmp.eq.s32.totalorder %s132, 0
      %s135 = sadd.s32 %s134, 1
      %s136 = scalar_select %p133, %s134, %s135
      %p139 = pneg %p133
      %p140 = scmp.eq.s32.totalorder %s14, 1
      %p141 = por %p139, %p140
      %p142 = scmp.ne.s32.totalorder %s134, %s137
      %p143 = scmp.eq.s32.totalorder %s14, 0
      %p144 = por %p142, %p143
      %p145 = scmp.ne.s32.totalorder %s134, %s137
      %p146 = scmp.eq.s32.totalorder %s19, 1
      %p147 = por %p145, %p146
      %p148 = scmp.ne.s32.totalorder %s137, %s138
      %p149 = scmp.eq.s32.totalorder %s19, 0
      %p150 = por %p148, %p149
      %p151 = scmp.ne.s32.totalorder %s137, %s138
      %p152 = scmp.eq.s32.totalorder %s20, 1
      %p153 = por %p151, %p152
      %p155 = scmp.ne.s32.totalorder %s138, %s154
      %p156 = scmp.eq.s32.totalorder %s20, 0
      %p157 = por %p155, %p156
      %p158 = scmp.le.s32.totalorder 1, %s14
      %p159 = scmp.lt.s32.totalorder %s14, 3
      %p160 = pnand %p158, %p159
      %p161 = pneg %p160
      // Predicated region
      $region9: #{tpu_custom_call.1} parent=5 // pred_check
        _
      $region10: #{tpu_custom_call.1} parent=5 // pred_check_branch
        %163 = sbr.rel (%p160) target = $region12
      $region11: #{tpu_custom_call.1} parent=5 // pred_region
        %s164 = ssub.s32 %s14, 1
        // Predicated region
        $region13: #{tpu_custom_call.1} parent=11 // pred_check
          %p165 = pneg %p61
        $region14: #{tpu_custom_call.1} parent=11 // pred_check_branch
          %167 = sbr.rel (%p165) target = $region16
        $region15: #{tpu_custom_call.1} parent=11 // pred_region
          _
        $region16: #{tpu_custom_call.1} parent=11 // pred_fallthru
          _
        // Predicated region
        $region17: #{tpu_custom_call.1} parent=11 // pred_check
          %p168 = pneg %p82
        $region18: #{tpu_custom_call.1} parent=11 // pred_check_branch
          %170 = sbr.rel (%p168) target = $region20
        $region19: #{tpu_custom_call.1} parent=11 // pred_region
          _
        $region20: #{tpu_custom_call.1} parent=11 // pred_fallthru
          _
        // Predicated region
        $region21: #{tpu_custom_call.1} parent=11 // pred_check
          %p171 = pneg %p103
        $region22: #{tpu_custom_call.1} parent=11 // pred_check_branch
          %173 = sbr.rel (%p171) target = $region24
        $region23: #{tpu_custom_call.1} parent=11 // pred_region
          _
        $region24: #{tpu_custom_call.1} parent=11 // pred_fallthru
          _
        // Predicated region
        $region25: #{tpu_custom_call.1} parent=11 // pred_check
          %p174 = pneg %p124
        $region26: #{tpu_custom_call.1} parent=11 // pred_check_branch
          %176 = sbr.rel (%p174) target = $region28
        $region27: #{tpu_custom_call.1} parent=11 // pred_region
          _
        $region28: #{tpu_custom_call.1} parent=11 // pred_fallthru
          _
      $region12: #{tpu_custom_call.1} parent=5 // pred_fallthru
        _
      %p177 = scmp.lt.s32.totalorder %s14, 2
      // Predicated region
      $region29: #{tpu_custom_call.1} parent=5 // pred_check
        %p178 = pneg %p177
      $region30: #{tpu_custom_call.1} parent=5 // pred_check_branch
        %180 = sbr.rel (%p178) target = $region32
      $region31: #{tpu_custom_call.1} parent=5 // pred_region
        // Predicated region
        $region33: #{tpu_custom_call.1} parent=31 // pred_check
          %p181 = pneg %p34
        $region34: #{tpu_custom_call.1} parent=31 // pred_check_branch
          %183 = sbr.rel (%p181) target = $region36
        $region35: #{tpu_custom_call.1} parent=31 // pred_region
          %p184 = scmp.lt.s32.totalorder %s14, 1
          %s185 = scalar_select %p184, %s14, 1
          %s186 = smul.addr %s185, 8
          %s187 = scalar_lea.vmem %s0, %s186
        $region36: #{tpu_custom_call.1} parent=31 // pred_fallthru
          _
      $region32: #{tpu_custom_call.1} parent=5 // pred_fallthru
        _
      %p188 = scmp.le.s32.totalorder 1, %s14
      %p189 = scmp.lt.s32.totalorder %s14, 3
      %p190 = pnand %p188, %p189
      %p191 = pneg %p190
      // Predicated region
      $region37: #{tpu_custom_call.1} parent=5 // pred_check
        _
      $region38: #{tpu_custom_call.1} parent=5 // pred_check_branch
        %193 = sbr.rel (%p190) target = $region40
      $region39: #{tpu_custom_call.1} parent=5 // pred_region
        %s194 = ssub.s32 %s14, 1
        %p195 = scmp.lt.s32.totalorder %s19, 1
        %s196 = scalar_select %p195, %s19, 1
        %s197 = smul.addr %s196, 8
        %s198 = scalar_lea.vmem %s0, %s197
        %p199 = pneg %p40
        %p200 = pneg %p37
        %p201 = pneg %p61
        %p202 = pneg %p58
        %p203 = pneg %p82
        %p204 = pneg %p79
        %p205 = pneg %p103
        %p206 = pneg %p100
        %p207 = pneg %p124
        %p208 = pneg %p121
        %p209 = pneg %p150
        %p210 = pneg %p147
        %s211 = sand.u32 %s137, 1
        %s212 = scalar_lea.sflag [#allocation3], %s211
        %s213 = sand.u32 %s137, 1
        %s214 = smul.addr %s213, 8
        %s215 = scalar_lea.vmem [#allocation2], %s214
        %p216 = scmp.lt.s32.totalorder %s19, 1
        %s217 = scalar_select %p216, %s19, 1
        %s218 = smul.addr %s217, 8
        %s219 = scalar_lea.vmem %s0, %s218
        %v220 = vld [vmem:[%s219] sm:$0xff]
        %v221 = vld [vmem:[%s1] sm:$0xff]
        %vm222 = vcmask 261120
        %v223 = vsel %vm222, %v220, 0.0
        %224 = vadd.xlane.f32.xlu0 %v223
        %v225 = vpop.xlane.xlu0 %224
        %v226 = vrcp.pop 32.0
        %v227 = vmul.f32 32.0, %v226
        %v228 = vsub.f32 1.0, %v227
        %v229 = vmul.f32 %v226, %v228
        %v230 = vadd.f32 %v226, %v229
        %vm231 = vweird.f32 %v226
        %v232 = vsel %vm231, %v226, %v230
        %v233 = vmul.f32 %v225, %v232
        %v234 = vsub.f32 %v220, %v233
        %v235 = vmul.f32 %v234, %v234
        %v236 = vsel %vm222, %v235, 0.0
        %237 = vadd.xlane.f32.xlu0 %v236
        %v238 = vpop.xlane.xlu0 %237
        %v239 = vmul.f32 %v238, %v232
        %v240 = vadd.f32 %v239, 1e-05
        %v241 = vrsqrt.pop %v240
        %v242 = vmul.f32 %v241, %v240
        %v243 = vmul.f32 %v242, %v241
        %v244 = vmul.f32 0.5, %v243
        %v245 = vsub.f32 1.5, %v244
        %v246 = vmul.f32 %v241, %v245
        %vm247 = vweird.f32 %v240
        %vm248 = vweird.f32 %v241
        %vm249 = vmor %vm247, %vm248
        %v250 = vsel %vm249, %v241, %v246
        %v251 = vmul.f32 %v234, %v250
        %v252 = vperm.slane %v221, 0
        %v253 = vmul.f32 %v251, %v252
        %v254 = vperm.slane %v221, 1
        %v255 = vadd.f32 %v253, %v254
        %v256 = vld [vmem:[%s2] sm:$0xff]
        %v257 = vld [vmem:[%s2 + $0x8] sm:$0xff]
        %v258 = vld [vmem:[%s2 + $0x10] sm:$0xff]
        %v259 = vld [vmem:[%s2 + $0x18] sm:$0xff]
        %v261 = vsel %vm222, %v255, 0
        %263 = vmatpush.msra.mxu0 0.0
        %264 = vmatpush.msra.mxu0 0.0
        %265 = vmatpush.msra.mxu0 0.0
        %266 = vmatpush.msra.mxu0 0.0
        %267 = vmatpush.msra.mxu0 0.0
        %268 = vmatpush.msra.mxu0 0.0
        %269 = vmatpush.msra.mxu0 0.0
        %270 = vmatpush.msra.mxu0 0.0
        %271 = vmatpush.msra.mxu0 0.0
        %272 = vmatpush.msra.mxu0 0.0
        %273 = vmatpush.msra.mxu0 0.0
        %274 = vmatpush.msra.mxu0 0.0
        %275 = vmatpush.msra.mxu0 %v259
        %276 = vmatpush.msra.mxu0 %v258
        %277 = vmatpush.msra.mxu0 %v257
        %278 = vmatpush.msra.mxu0 %v256
        %279 = vmatmul.f32.gmra.mxu0 %v261
        %v280 = vpop.f32.mrf.mxu0
        %v281 = vadd.f32 0.0, %v280
        %282 = vdwg.mxu0
        %v283 = vlaneseq
        %v284 = vshrl.u32 %v283, 7
        %v285 = vlaneseq
        %v286 = vand.u32 %v285, 127
        %vm287 = vcmp.le.s32.totalorder %v286, %v284
        %v288 = vsel %vm287, 0.0, -1e+30
        %v289 = vmul.f32 %v281, 0.35355338
        %291 = vrot.lane.b32.xlu0 %v281, 96
        %v292 = vpop.permute.xlu0 %291
        %vm293 = vcmask 64512
        %v295 = vsel %vm293, %v289, 0
        %v297 = vsel %vm293, %v292, 0
        %299 = vmatpush.xpose.msra.mxu0 0.0
        %300 = vmatpush.xpose.msra.mxu0 0.0
        %301 = vmatpush.xpose.msra.mxu0 0.0
        %302 = vmatpush.xpose.msra.mxu0 0.0
        %303 = vmatpush.xpose.msra.mxu0 0.0
        %304 = vmatpush.xpose.msra.mxu0 0.0
        %305 = vmatpush.xpose.msra.mxu0 0.0
        %306 = vmatpush.xpose.msra.mxu0 0.0
        %307 = vmatpush.xpose.msra.mxu0 0.0
        %308 = vmatpush.xpose.msra.mxu0 0.0
        %309 = vmatpush.xpose.msra.mxu0 0.0
        %310 = vmatpush.xpose.msra.mxu0 0.0
        %311 = vmatpush.xpose.msra.mxu0 0.0
        %312 = vmatpush.xpose.msra.mxu0 0.0
        %313 = vmatpush.xpose.msra.mxu0 0.0
        %314 = vmatpush.xpose.msra.mxu0 %v297
        %315 = vmatmul.f32.gmra.mxu0 %v295
        %v316 = vpop.f32.mrf.mxu0
        %v317 = vadd.f32 %v288, %v316
        %318 = vdwg.mxu0
        %v319 = vsel %vm293, %v317, -inf
        %320 = vmax.xlane.f32.xlu0 %v319
        %v321 = vpop.xlane.xlu0 %320
        %v322 = vsub.f32 %v317, %v321
        %v323 = vmul.f32 %v322, 1.442695
        %v324 = vpow.pop %v323
        %v325 = vsel %vm293, %v324, 0.0
        %326 = vadd.xlane.f32.xlu0 %v325
        %v327 = vpop.xlane.xlu0 %326
        %v328 = vrcp.pop %v327
        %v329 = vmul.f32 %v324, %v328
        %330 = vrot.lane.b32.xlu0 %v281, 64
        %v331 = vpop.permute.xlu0 %330
        %v334 = vsel %vm293, %v329, 0
        %336 = vmatpush.msra.mxu0 0.0
        %337 = vmatpush.msra.mxu0 0.0
        %338 = vmatpush.msra.mxu0 0.0
        %339 = vmatpush.msra.mxu0 0.0
        %340 = vmatpush.msra.mxu0 0.0
        %341 = vmatpush.msra.mxu0 0.0
        %342 = vmatpush.msra.mxu0 0.0
        %343 = vmatpush.msra.mxu0 0.0
        %344 = vmatpush.msra.mxu0 0.0
        %345 = vmatpush.msra.mxu0 0.0
        %346 = vmatpush.msra.mxu0 0.0
        %347 = vmatpush.msra.mxu0 0.0
        %348 = vmatpush.msra.mxu0 0.0
        %349 = vmatpush.msra.mxu0 0.0
        %350 = vmatpush.msra.mxu0 0.0
        %351 = vmatpush.msra.mxu0 %v331
        %352 = vmatmul.f32.gmra.mxu0 %v334
        %v353 = vpop.f32.mrf.mxu0
        %v354 = vadd.f32 0.0, %v353
        %355 = vdwg.mxu0
        %356 = vrot.lane.b32.xlu0 %v289, 120
        %v357 = vpop.permute.xlu0 %356
        %358 = vrot.lane.b32.xlu0 %v281, 88
        %v359 = vpop.permute.xlu0 %358
        %v360 = vsel %vm293, %v357, 0
        %v362 = vsel %vm293, %v359, 0
        %364 = vmatpush.xpose.msra.mxu0 0.0
        %365 = vmatpush.xpose.msra.mxu0 0.0
        %366 = vmatpush.xpose.msra.mxu0 0.0
        %367 = vmatpush.xpose.msra.mxu0 0.0
        %368 = vmatpush.xpose.msra.mxu0 0.0
        %369 = vmatpush.xpose.msra.mxu0 0.0
        %370 = vmatpush.xpose.msra.mxu0 0.0
        %371 = vmatpush.xpose.msra.mxu0 0.0
        %372 = vmatpush.xpose.msra.mxu0 0.0
        %373 = vmatpush.xpose.msra.mxu0 0.0
        %374 = vmatpush.xpose.msra.mxu0 0.0
        %375 = vmatpush.xpose.msra.mxu0 0.0
        %376 = vmatpush.xpose.msra.mxu0 0.0
        %377 = vmatpush.xpose.msra.mxu0 0.0
        %378 = vmatpush.xpose.msra.mxu0 0.0
        %379 = vmatpush.xpose.msra.mxu0 %v362
        %380 = vmatmul.f32.gmra.mxu0 %v360
        %v381 = vpop.f32.mrf.mxu0
        %v382 = vadd.f32 %v288, %v381
        %383 = vdwg.mxu0
        %v384 = vsel %vm293, %v382, -inf
        %385 = vmax.xlane.f32.xlu0 %v384
        %v386 = vpop.xlane.xlu0 %385
        %v387 = vsub.f32 %v382, %v386
        %v388 = vmul.f32 %v387, 1.442695
        %v389 = vpow.pop %v388
        %v390 = vsel %vm293, %v389, 0.0
        %391 = vadd.xlane.f32.xlu0 %v390
        %v392 = vpop.xlane.xlu0 %391
        %v393 = vrcp.pop %v392
        %v394 = vmul.f32 %v389, %v393
        %395 = vrot.lane.b32.xlu0 %v281, 56
        %v396 = vpop.permute.xlu0 %395
        %v399 = vsel %vm293, %v394, 0
        %401 = vmatpush.msra.mxu0 0.0
        %402 = vmatpush.msra.mxu0 0.0
        %403 = vmatpush.msra.mxu0 0.0
        %404 = vmatpush.msra.mxu0 0.0
        %405 = vmatpush.msra.mxu0 0.0
        %406 = vmatpush.msra.mxu0 0.0
        %407 = vmatpush.msra.mxu0 0.0
        %408 = vmatpush.msra.mxu0 0.0
        %409 = vmatpush.msra.mxu0 0.0
        %410 = vmatpush.msra.mxu0 0.0
        %411 = vmatpush.msra.mxu0 0.0
        %412 = vmatpush.msra.mxu0 0.0
        %413 = vmatpush.msra.mxu0 0.0
        %414 = vmatpush.msra.mxu0 0.0
        %415 = vmatpush.msra.mxu0 0.0
        %416 = vmatpush.msra.mxu0 %v396
        %417 = vmatmul.f32.gmra.mxu0 %v399
        %v418 = vpop.f32.mrf.mxu0
        %v419 = vadd.f32 0.0, %v418
        %420 = vdwg.mxu0
        %422 = vrot.lane.b32.xlu0 %v257, 32
        %v423 = vpop.permute.xlu0 %422
        %v426 = vsel %vm293, %v419, 0
        %428 = vmatpush.msra.mxu0 0.0
        %429 = vmatpush.msra.mxu0 0.0
        %430 = vmatpush.msra.mxu0 0.0
        %431 = vmatpush.msra.mxu0 0.0
        %432 = vmatpush.msra.mxu0 0.0
        %433 = vmatpush.msra.mxu0 0.0
        %434 = vmatpush.msra.mxu0 0.0
        %435 = vmatpush.msra.mxu0 0.0
        %436 = vmatpush.msra.mxu0 0.0
        %437 = vmatpush.msra.mxu0 0.0
        %438 = vmatpush.msra.mxu0 0.0
        %439 = vmatpush.msra.mxu0 0.0
        %440 = vmatpush.msra.mxu0 0.0
        %441 = vmatpush.msra.mxu0 0.0
        %442 = vmatpush.msra.mxu0 0.0
        %443 = vmatpush.msra.mxu0 %v423
        %444 = vmatmul.f32.gmra.mxu0 %v426
        %v445 = vpop.f32.mrf.mxu0
        %v446 = vadd.f32 0.0, %v445
        %447 = vdwg.mxu0
        %449 = vrot.lane.b32.xlu0 %v256, 32
        %v450 = vpop.permute.xlu0 %449
        %v453 = vsel %vm293, %v354, 0
        %455 = vmatpush.msra.mxu0 0.0
        %456 = vmatpush.msra.mxu0 0.0
        %457 = vmatpush.msra.mxu0 0.0
        %458 = vmatpush.msra.mxu0 0.0
        %459 = vmatpush.msra.mxu0 0.0
        %460 = vmatpush.msra.mxu0 0.0
        %461 = vmatpush.msra.mxu0 0.0
        %462 = vmatpush.msra.mxu0 0.0
        %463 = vmatpush.msra.mxu0 0.0
        %464 = vmatpush.msra.mxu0 0.0
        %465 = vmatpush.msra.mxu0 0.0
        %466 = vmatpush.msra.mxu0 0.0
        %467 = vmatpush.msra.mxu0 0.0
        %468 = vmatpush.msra.mxu0 0.0
        %469 = vmatpush.msra.mxu0 0.0
        %470 = vmatpush.msra.mxu0 %v450
        %471 = vmatmul.f32.gmra.mxu0 %v453
        %v472 = vpop.f32.mrf.mxu0
        %v473 = vadd.f32 %v446, %v472
        %474 = vdwg.mxu0
        %475 = vrot.lane.b32.xlu0 %v289, 112
        %v476 = vpop.permute.xlu0 %475
        %477 = vrot.lane.b32.xlu0 %v281, 80
        %v478 = vpop.permute.xlu0 %477
        %v479 = vsel %vm293, %v476, 0
        %v481 = vsel %vm293, %v478, 0
        %483 = vmatpush.xpose.msra.mxu0 0.0
        %484 = vmatpush.xpose.msra.mxu0 0.0
        %485 = vmatpush.xpose.msra.mxu0 0.0
        %486 = vmatpush.xpose.msra.mxu0 0.0
        %487 = vmatpush.xpose.msra.mxu0 0.0
        %488 = vmatpush.xpose.msra.mxu0 0.0
        %489 = vmatpush.xpose.msra.mxu0 0.0
        %490 = vmatpush.xpose.msra.mxu0 0.0
        %491 = vmatpush.xpose.msra.mxu0 0.0
        %492 = vmatpush.xpose.msra.mxu0 0.0
        %493 = vmatpush.xpose.msra.mxu0 0.0
        %494 = vmatpush.xpose.msra.mxu0 0.0
        %495 = vmatpush.xpose.msra.mxu0 0.0
        %496 = vmatpush.xpose.msra.mxu0 0.0
        %497 = vmatpush.xpose.msra.mxu0 0.0
        %498 = vmatpush.xpose.msra.mxu0 %v481
        %499 = vmatmul.f32.gmra.mxu0 %v479
        %v500 = vpop.f32.mrf.mxu0
        %v501 = vadd.f32 %v288, %v500
        %502 = vdwg.mxu0
        %v503 = vsel %vm293, %v501, -inf
        %504 = vmax.xlane.f32.xlu0 %v503
        %v505 = vpop.xlane.xlu0 %504
        %v506 = vsub.f32 %v501, %v505
        %v507 = vmul.f32 %v506, 1.442695
        %v508 = vpow.pop %v507
        %v509 = vsel %vm293, %v508, 0.0
        %510 = vadd.xlane.f32.xlu0 %v509
        %v511 = vpop.xlane.xlu0 %510
        %v512 = vrcp.pop %v511
        %v513 = vmul.f32 %v508, %v512
        %514 = vrot.lane.b32.xlu0 %v281, 48
        %v515 = vpop.permute.xlu0 %514
        %v518 = vsel %vm293, %v513, 0
        %520 = vmatpush.msra.mxu0 0.0
        %521 = vmatpush.msra.mxu0 0.0
        %522 = vmatpush.msra.mxu0 0.0
        %523 = vmatpush.msra.mxu0 0.0
        %524 = vmatpush.msra.mxu0 0.0
        %525 = vmatpush.msra.mxu0 0.0
        %526 = vmatpush.msra.mxu0 0.0
        %527 = vmatpush.msra.mxu0 0.0
        %528 = vmatpush.msra.mxu0 0.0
        %529 = vmatpush.msra.mxu0 0.0
        %530 = vmatpush.msra.mxu0 0.0
        %531 = vmatpush.msra.mxu0 0.0
        %532 = vmatpush.msra.mxu0 0.0
        %533 = vmatpush.msra.mxu0 0.0
        %534 = vmatpush.msra.mxu0 0.0
        %535 = vmatpush.msra.mxu0 %v515
        %536 = vmatmul.f32.gmra.mxu0 %v518
        %v537 = vpop.f32.mrf.mxu0
        %v538 = vadd.f32 0.0, %v537
        %539 = vdwg.mxu0
        %541 = vrot.lane.b32.xlu0 %v258, 32
        %v542 = vpop.permute.xlu0 %541
        %v545 = vsel %vm293, %v538, 0
        %547 = vmatpush.msra.mxu0 0.0
        %548 = vmatpush.msra.mxu0 0.0
        %549 = vmatpush.msra.mxu0 0.0
        %550 = vmatpush.msra.mxu0 0.0
        %551 = vmatpush.msra.mxu0 0.0
        %552 = vmatpush.msra.mxu0 0.0
        %553 = vmatpush.msra.mxu0 0.0
        %554 = vmatpush.msra.mxu0 0.0
        %555 = vmatpush.msra.mxu0 0.0
        %556 = vmatpush.msra.mxu0 0.0
        %557 = vmatpush.msra.mxu0 0.0
        %558 = vmatpush.msra.mxu0 0.0
        %559 = vmatpush.msra.mxu0 0.0
        %560 = vmatpush.msra.mxu0 0.0
        %561 = vmatpush.msra.mxu0 0.0
        %562 = vmatpush.msra.mxu0 %v542
        %563 = vmatmul.f32.gmra.mxu0 %v545
        %v564 = vpop.f32.mrf.mxu0
        %v565 = vadd.f32 0.0, %v564
        %566 = vdwg.mxu0
        %v567 = vadd.f32 %v473, %v565
        %568 = vrot.lane.b32.xlu0 %v289, 104
        %v569 = vpop.permute.xlu0 %568
        %570 = vrot.lane.b32.xlu0 %v281, 72
        %v571 = vpop.permute.xlu0 %570
        %v572 = vsel %vm293, %v569, 0
        %v574 = vsel %vm293, %v571, 0
        %576 = vmatpush.xpose.msra.mxu0 0.0
        %577 = vmatpush.xpose.msra.mxu0 0.0
        %578 = vmatpush.xpose.msra.mxu0 0.0
        %579 = vmatpush.xpose.msra.mxu0 0.0
        %580 = vmatpush.xpose.msra.mxu0 0.0
        %581 = vmatpush.xpose.msra.mxu0 0.0
        %582 = vmatpush.xpose.msra.mxu0 0.0
        %583 = vmatpush.xpose.msra.mxu0 0.0
        %584 = vmatpush.xpose.msra.mxu0 0.0
        %585 = vmatpush.xpose.msra.mxu0 0.0
        %586 = vmatpush.xpose.msra.mxu0 0.0
        %587 = vmatpush.xpose.msra.mxu0 0.0
        %588 = vmatpush.xpose.msra.mxu0 0.0
        %589 = vmatpush.xpose.msra.mxu0 0.0
        %590 = vmatpush.xpose.msra.mxu0 0.0
        %591 = vmatpush.xpose.msra.mxu0 %v574
        %592 = vmatmul.f32.gmra.mxu0 %v572
        %v593 = vpop.f32.mrf.mxu0
        %v594 = vadd.f32 %v288, %v593
        %595 = vdwg.mxu0
        %v596 = vsel %vm293, %v594, -inf
        %597 = vmax.xlane.f32.xlu0 %v596
        %v598 = vpop.xlane.xlu0 %597
        %v599 = vsub.f32 %v594, %v598
        %v600 = vmul.f32 %v599, 1.442695
        %v601 = vpow.pop %v600
        %v602 = vsel %vm293, %v601, 0.0
        %603 = vadd.xlane.f32.xlu0 %v602
        %v604 = vpop.xlane.xlu0 %603
        %v605 = vrcp.pop %v604
        %v606 = vmul.f32 %v601, %v605
        %607 = vrot.lane.b32.xlu0 %v281, 40
        %v608 = vpop.permute.xlu0 %607
        %v611 = vsel %vm293, %v606, 0
        %613 = vmatpush.msra.mxu0 0.0
        %614 = vmatpush.msra.mxu0 0.0
        %615 = vmatpush.msra.mxu0 0.0
        %616 = vmatpush.msra.mxu0 0.0
        %617 = vmatpush.msra.mxu0 0.0
        %618 = vmatpush.msra.mxu0 0.0
        %619 = vmatpush.msra.mxu0 0.0
        %620 = vmatpush.msra.mxu0 0.0
        %621 = vmatpush.msra.mxu0 0.0
        %622 = vmatpush.msra.mxu0 0.0
        %623 = vmatpush.msra.mxu0 0.0
        %624 = vmatpush.msra.mxu0 0.0
        %625 = vmatpush.msra.mxu0 0.0
        %626 = vmatpush.msra.mxu0 0.0
        %627 = vmatpush.msra.mxu0 0.0
        %628 = vmatpush.msra.mxu0 %v608
        %629 = vmatmul.f32.gmra.mxu0 %v611
        %v630 = vpop.f32.mrf.mxu0
        %v631 = vadd.f32 0.0, %v630
        %632 = vdwg.mxu0
        %634 = vrot.lane.b32.xlu0 %v259, 32
        %v635 = vpop.permute.xlu0 %634
        %v638 = vsel %vm293, %v631, 0
        %640 = vmatpush.msra.mxu0 0.0
        %641 = vmatpush.msra.mxu0 0.0
        %642 = vmatpush.msra.mxu0 0.0
        %643 = vmatpush.msra.mxu0 0.0
        %644 = vmatpush.msra.mxu0 0.0
        %645 = vmatpush.msra.mxu0 0.0
        %646 = vmatpush.msra.mxu0 0.0
        %647 = vmatpush.msra.mxu0 0.0
        %648 = vmatpush.msra.mxu0 0.0
        %649 = vmatpush.msra.mxu0 0.0
        %650 = vmatpush.msra.mxu0 0.0
        %651 = vmatpush.msra.mxu0 0.0
        %652 = vmatpush.msra.mxu0 0.0
        %653 = vmatpush.msra.mxu0 0.0
        %654 = vmatpush.msra.mxu0 0.0
        %655 = vmatpush.msra.mxu0 %v635
        %656 = vmatmul.f32.gmra.mxu0 %v638
        %v657 = vpop.f32.mrf.mxu0
        %v658 = vadd.f32 0.0, %v657
        %659 = vdwg.mxu0
        %v660 = vadd.f32 %v567, %v658
        %v661 = vadd.f32 %v220, %v660
        %v662 = vperm.slane %v221, 4
        %v663 = vadd.f32 %v661, %v662
        %v664 = vsel %vm222, %v663, 0.0
        %665 = vadd.xlane.f32.xlu0 %v664
        %v666 = vpop.xlane.xlu0 %665
        %v667 = vmul.f32 %v666, %v232
        %v668 = vsub.f32 %v663, %v667
        %v669 = vmul.f32 %v668, %v668
        %v670 = vsel %vm222, %v669, 0.0
        %671 = vadd.xlane.f32.xlu0 %v670
        %v672 = vpop.xlane.xlu0 %671
        %v673 = vmul.f32 %v672, %v232
        %v674 = vadd.f32 %v673, 1e-05
        %v675 = vrsqrt.pop %v674
        %v676 = vmul.f32 %v675, %v674
        %v677 = vmul.f32 %v676, %v675
        %v678 = vmul.f32 0.5, %v677
        %v679 = vsub.f32 1.5, %v678
        %v680 = vmul.f32 %v675, %v679
        %vm681 = vweird.f32 %v674
        %vm682 = vweird.f32 %v675
        %vm683 = vmor %vm681, %vm682
        %v684 = vsel %vm683, %v675, %v680
        %v685 = vmul.f32 %v668, %v684
        %v686 = vperm.slane %v221, 2
        %v687 = vmul.f32 %v685, %v686
        %v688 = vperm.slane %v221, 3
        %v689 = vadd.f32 %v687, %v688
        %v690 = vld [vmem:[%s3] sm:$0xff]
        %v691 = vld [vmem:[%s3 + $0x8] sm:$0xff]
        %v692 = vld [vmem:[%s3 + $0x10] sm:$0xff]
        %v693 = vld [vmem:[%s3 + $0x18] sm:$0xff]
        %v694 = vld [vmem:[%s3 + $0x20] sm:$0x1]
        %v695 = vperm.slane %v694, 0
        %v697 = vsel %vm222, %v689, 0
        %699 = vmatpush.msra.mxu0 0.0
        %700 = vmatpush.msra.mxu0 0.0
        %701 = vmatpush.msra.mxu0 0.0
        %702 = vmatpush.msra.mxu0 0.0
        %703 = vmatpush.msra.mxu0 0.0
        %704 = vmatpush.msra.mxu0 0.0
        %705 = vmatpush.msra.mxu0 0.0
        %706 = vmatpush.msra.mxu0 0.0
        %707 = vmatpush.msra.mxu0 0.0
        %708 = vmatpush.msra.mxu0 0.0
        %709 = vmatpush.msra.mxu0 0.0
        %710 = vmatpush.msra.mxu0 0.0
        %711 = vmatpush.msra.mxu0 %v693
        %712 = vmatpush.msra.mxu0 %v692
        %713 = vmatpush.msra.mxu0 %v691
        %714 = vmatpush.msra.mxu0 %v690
        %715 = vmatmul.f32.gmra.mxu0 %v697
        %v716 = vpop.f32.mrf.mxu0
        %v717 = vadd.f32 %v695, %v716
        %718 = vdwg.mxu0
        %v719 = vmul.f32 %v717, 0.5
        %v720 = vmul.f32 %v717, 0.044715
        %v721 = vmul.f32 %v720, %v717
        %v722 = vmul.f32 %v721, %v717
        %v723 = vadd.f32 %v717, %v722
        %v724 = vmul.f32 %v723, 0.7978846
        %v725 = vtanh.pop %v724
        %v726 = vadd.f32 %v725, 1.0
        %v727 = vmul.f32 %v719, %v726
        %v728 = vld [vmem:[%s4] sm:$0xff]
        %v729 = vld [vmem:[%s4 + $0x8] sm:$0xff]
        %v730 = vld [vmem:[%s4 + $0x10] sm:$0xff]
        %v731 = vld [vmem:[%s4 + $0x18] sm:$0xff]
        %v732 = vld [vmem:[%s4 + $0x20] sm:$0xff]
        %v733 = vld [vmem:[%s4 + $0x28] sm:$0xff]
        %v734 = vld [vmem:[%s4 + $0x30] sm:$0xff]
        %v735 = vld [vmem:[%s4 + $0x38] sm:$0xff]
        %v736 = vld [vmem:[%s4 + $0x40] sm:$0xff]
        %v737 = vld [vmem:[%s4 + $0x48] sm:$0xff]
        %v738 = vld [vmem:[%s4 + $0x50] sm:$0xff]
        %v739 = vld [vmem:[%s4 + $0x58] sm:$0xff]
        %v740 = vld [vmem:[%s4 + $0x60] sm:$0xff]
        %v741 = vld [vmem:[%s4 + $0x68] sm:$0xff]
        %v742 = vld [vmem:[%s4 + $0x70] sm:$0xff]
        %v743 = vld [vmem:[%s4 + $0x78] sm:$0xff]
        %v744 = vperm.slane %v221, 5
        %745 = vmatpush.msra.mxu0 %v743
        %746 = vmatpush.msra.mxu0 %v742
        %747 = vmatpush.msra.mxu0 %v741
        %748 = vmatpush.msra.mxu0 %v740
        %749 = vmatpush.msra.mxu0 %v739
        %750 = vmatpush.msra.mxu0 %v738
        %751 = vmatpush.msra.mxu0 %v737
        %752 = vmatpush.msra.mxu0 %v736
        %753 = vmatpush.msra.mxu0 %v735
        %754 = vmatpush.msra.mxu0 %v734
        %755 = vmatpush.msra.mxu0 %v733
        %756 = vmatpush.msra.mxu0 %v732
        %757 = vmatpush.msra.mxu0 %v731
        %758 = vmatpush.msra.mxu0 %v730
        %759 = vmatpush.msra.mxu0 %v729
        %760 = vmatpush.msra.mxu0 %v728
        %761 = vmatmul.f32.gmra.mxu0 %v727
        %v762 = vpop.f32.mrf.mxu0
        %v763 = vadd.f32 %v744, %v762
        %764 = vdwg.mxu0
        %v765 = vadd.f32 %v663, %v763
        %766 = vst.msk [vmem:[%s215] sm:$0xff] %vm222, %v765
        %s767 = sand.u32 %s137, 1
        %s768 = scalar_lea.sflag [#allocation3], %s767
        %s769 = sand.u32 %s137, 1
        %s770 = smul.addr %s769, 8
        %s771 = scalar_lea.vmem [#allocation2], %s770
        // Predicated region
        $region41: #{tpu_custom_call.1} parent=39 // pred_check
          %p772 = pneg %p147
        $region42: #{tpu_custom_call.1} parent=39 // pred_check_branch
          %774 = sbr.rel (%p772) target = $region44
        $region43: #{tpu_custom_call.1} parent=39 // pred_region
          %776 = vsyncadd %s768, 0
          %s777 = smul.addr %s19, 8
          %s778 = scalar_lea.hbm %s5, %s777
          %s780 = sshll.u32 %s771, 4
          %s781 = int_to_ptr.vmem [resolvable:$true] %s780
          %s782 = sshll.u32 %s778, 4
          %s783 = int_to_ptr.hbm [resolvable:$true] %s782
          %785 = dma.vmem_to_hbm [thread:$0]  %s781, 128, %s783, %s768
        $region44: #{tpu_custom_call.1} parent=39 // pred_fallthru
          _
      $region40: #{tpu_custom_call.1} parent=5 // pred_fallthru
        _
      %p786 = scmp.le.s32.totalorder 2, %s14
      // Predicated region
      $region45: #{tpu_custom_call.1} parent=5 // pred_check
        %p787 = pneg %p786
      $region46: #{tpu_custom_call.1} parent=5 // pred_check_branch
        %789 = sbr.rel (%p787) target = $region48
      $region47: #{tpu_custom_call.1} parent=5 // pred_region
        %s790 = ssub.s32 %s14, 2
        // Predicated region
        $region49: #{tpu_custom_call.1} parent=47 // pred_check
          %p791 = pneg %p153
        $region50: #{tpu_custom_call.1} parent=47 // pred_check_branch
          %793 = sbr.rel (%p791) target = $region52
        $region51: #{tpu_custom_call.1} parent=47 // pred_region
          %s794 = sand.u32 %s138, 1
          %s795 = scalar_lea.sflag [#allocation3], %s794
          %s796 = sand.u32 %s138, 1
          %s797 = smul.addr %s796, 8
          %s798 = scalar_lea.vmem [#allocation2], %s797
          %800 = dma.done %s795, 128
        $region52: #{tpu_custom_call.1} parent=47 // pred_fallthru
          _
      $region48: #{tpu_custom_call.1} parent=5 // pred_fallthru
        _
    $region6: #{tpu_custom_call.1} parent=1 // loop_footer
      %s18 = sadd.s32 1, %s14
    $region7: #{tpu_custom_call.1} parent=1 // loop_footer_branch
      %13 = sbr.rel target = $region3
    $region8: #{tpu_custom_call.1} parent=1 // loop_exit
      _
    %801 = vsyncpa [#allocation3], 1
    %s802 = scalar_lea.sflag [#allocation3], 1
    %803 = vsyncpa %s802, 1

</llo_original>
